<compile_context>
chip_gen: v7x
topology: tpu7x:2x2x1
jax: 0.10.0
libtpu: 0.0.40
codegen_flags: <defaults>
</compile_context>

<pallas_src>
import jax
import jax.numpy as jnp
from jax.experimental import pallas as pl
from jax.experimental.pallas import tpu as pltpu

HIDDEN = 512   # nn.Linear(input_dim, 512)
LANE = 128
SUBLANE = 8


def _round_up(v, m):
    return (v + m - 1) // m * m


def _vmem_capacity_bytes():
    try:
        return int(pltpu.get_tpu_info().vmem_capacity_bytes)
    except Exception:
        return 64 << 20  # conservative: v7x per-TensorCore VMEM


def _mlp_kernel(x_ref, w1_ref, b1_ref, w2_ref, b2_ref, o_ref):
    # Cast activations f32->bf16 in-kernel (VPU) -- avoids a separate HBM pass.
    x = x_ref[...].astype(jnp.bfloat16)
    # fc1: (TB, D)bf16 @ (D, 512)bf16 -> f32 MXU accumulation.
    h = jnp.dot(x, w1_ref[...], preferred_element_type=jnp.float32)
    h = jnp.maximum(h + b1_ref[...], 0.0)          # bias + ReLU in f32
    # TODO(synk): Dropout(p=0.5) is identity in eval/inference mode; training-mode
    # stochastic masking (pltpu.prng_seed / prng_random_bits) intentionally omitted.
    # fc2: (TB, 512)bf16 @ (512, Cp)bf16 -> f32 accumulation.
    out = jnp.dot(h.astype(jnp.bfloat16), w2_ref[...],
                  preferred_element_type=jnp.float32)
    o_ref[...] = (out + b2_ref[...]).astype(o_ref.dtype)


def prepare_params(w1, b1, w2, b2):
    """One-time prep (hoisted out of the per-call path).

    Weights are stored pre-transposed (in_features, out_features) relative to
    PyTorch's nn.Linear.weight. Only the *output* feature dim is padded to a
    lane multiple (128); the contraction dim D is left unpadded so x never
    needs a padded HBM copy.
    """
    D = w1.shape[0]
    C = w2.shape[1]
    Cp = _round_up(C, LANE)
    w1_b = w1.astype(jnp.bfloat16)                                          # (D, 512)
    w2_p = jnp.zeros((HIDDEN, Cp), jnp.bfloat16).at[:, :C].set(
        w2.astype(jnp.bfloat16))                                            # (512, Cp)
    b1_2d = b1.astype(jnp.float32).reshape(1, HIDDEN)
    b2_2d = jnp.zeros((1, Cp), jnp.float32).at[0, :C].set(b2.astype(jnp.float32))
    return w1_b, b1_2d, w2_p, b2_2d


def mlp_forward(x, params, num_classes):
    """x: (B, D) f32; params from prepare_params(); returns (B, num_classes) f32."""
    w1_b, b1_2d, w2_p, b2_2d = params
    B, D = x.shape
    Cp = w2_p.shape[1]

    # --- batch tile: >=2 grid steps when possible (v7x megacore), 16-aligned ---
    if B <= 16:
        TB = _round_up(B, SUBLANE)
    else:
        TB = min(512, _round_up(pl.cdiv(B, 2), 16))

    # --- VMEM budget (per-chip): shrink TB if the footprint would not fit ---
    def _footprint(tb):
        return (2 * tb * D * 4                      # x tiles (f32, double-buffered)
                + 2 * tb * Cp * 4                   # out tiles (f32, double-buffered)
                + (D * HIDDEN + HIDDEN * Cp) * 2    # weights (bf16, single-buffered)
                + (HIDDEN + Cp) * 4                 # biases (f32, single-buffered)
                + tb * (D + HIDDEN) * 2             # in-kernel bf16 copies of x, h
                + tb * (HIDDEN + Cp) * 4)           # f32 h and pre-cast out

    budget = int(0.75 * _vmem_capacity_bytes())     # ~48 MiB v7x, ~96 MiB v5e/v6e
    # NOTE: for very large input_dim the resident w1 itself may exceed budget;
    # a K-tiled grid axis would be the next step (not needed at these sizes).
    while TB > 2 * SUBLANE and 2 * _footprint(TB) > budget:
        TB = _round_up(TB // 2, SUBLANE)

    Bp = _round_up(B, TB)
    grid = (Bp // TB,)
    vmem_limit = int(min(max(2 * _footprint(TB), 4 << 20), budget))

    # Cheap batch-row pad only when needed (no D padding, no dtype pre-pass).
    x_in = x if Bp == B else jnp.pad(x, ((0, Bp - B), (0, 0)))

    flops = 2 * Bp * (D * HIDDEN + HIDDEN * Cp)
    bytes_accessed = (Bp * D * 4 + D * HIDDEN * 2 + HIDDEN * Cp * 2
                      + (HIDDEN + Cp) * 4 + Bp * Cp * 4)

    def _run(single_buffer_weights):
        kw = dict(pipeline_mode=pl.Buffered(1)) if single_buffer_weights else {}

        def resident(shape):
            return pl.BlockSpec(shape, lambda i: (0, 0), **kw)

        return pl.pallas_call(
            _mlp_kernel,
            out_shape=jax.ShapeDtypeStruct((Bp, Cp), jnp.float32),
            grid=grid,
            in_specs=[
                pl.BlockSpec((TB, D), lambda i: (i, 0)),   # x: tiled over batch
                resident((D, HIDDEN)),                     # w1: VMEM-resident
                resident((1, HIDDEN)),                     # b1
                resident((HIDDEN, Cp)),                    # w2
                resident((1, Cp)),                         # b2
            ],
            out_specs=pl.BlockSpec((TB, Cp), lambda i: (i, 0)),
            compiler_params=pltpu.CompilerParams(
                dimension_semantics=("parallel",),         # megacore split on v7x
                vmem_limit_bytes=vmem_limit,
            ),
            cost_estimate=pl.CostEstimate(
                flops=flops, transcendentals=0, bytes_accessed=bytes_accessed),
        )(x_in, w1_b, b1_2d, w2_p, b2_2d)

    try:
        out_p = _run(True)
    except Exception:
        # Fallback if single-buffered (Buffered(1)) resident operands are not
        # supported by this Pallas/Mosaic build; semantics are identical.
        out_p = _run(False)

    # Strip lane/batch padding back to the logical (B, C) output.
    return out_p[:B, :num_classes]


def init_params(key, input_dim, num_classes):
    """Deterministic synthetic init matching nn.Linear shapes (stored transposed)."""
    k1, k2, k3, k4 = jax.random.split(key, 4)
    s1 = 1.0 / jnp.sqrt(input_dim)
    s2 = 1.0 / jnp.sqrt(HIDDEN)
    # PyTorch fc1.weight is (512, input_dim); we store its transpose (input_dim, 512).
    w1 = jax.random.uniform(k1, (input_dim, HIDDEN), jnp.float32, -s1, s1)
    b1 = jax.random.uniform(k2, (HIDDEN,), jnp.float32, -s1, s1)
    w2 = jax.random.uniform(k3, (HIDDEN, num_classes), jnp.float32, -s2, s2)
    b2 = jax.random.uniform(k4, (num_classes,), jnp.float32, -s2, s2)
    return w1, b1, w2, b2


if __name__ == "__main__":
    batch = 8
    input_dim = 64
    num_classes = 16

    key = jax.random.PRNGKey(0)
    kx, kp = jax.random.split(key)
    x = jax.random.normal(kx, (batch, input_dim), jnp.float32)
    w1, b1, w2, b2 = init_params(kp, input_dim, num_classes)

    # One-time param prep (padding / bf16 cast hoisted out of the forward path).
    params = prepare_params(w1, b1, w2, b2)

    out = mlp_forward(x, params, num_classes)
    jax.block_until_ready(out)

    # Reference in plain JAX f32 (eval-mode dropout == identity). Looser tol
    # because the kernel runs the matmuls with bf16 operands (f32 accumulation).
    ref = jnp.maximum(x @ w1 + b1, 0.0) @ w2 + b2
    assert out.shape == (batch, num_classes)
    assert jnp.allclose(out, ref, atol=5e-2, rtol=5e-2), \
        float(jnp.max(jnp.abs(out - ref)))

    print("KERNEL_OK")
</pallas_src>

<mosaic_0001>
module attributes {stable_mosaic.version = 11 : i64} {
  func.func @_mlp_kernel(%arg0: i32, %arg1: memref<8x64xf32, #tpu.memory_space<vmem>>, %arg2: memref<64x512xbf16, #tpu.memory_space<vmem>>, %arg3: memref<1x512xf32, #tpu.memory_space<vmem>>, %arg4: memref<512x128xbf16, #tpu.memory_space<vmem>>, %arg5: memref<1x128xf32, #tpu.memory_space<vmem>>, %arg6: memref<8x128xf32, #tpu.memory_space<vmem>>) attributes {dimension_semantics = [#tpu.dimension_semantics<parallel>], iteration_bounds = array<i64: 1>, scalar_prefetch = 0 : i64, scratch_operands = 0 : i64, tpu.core_type = #tpu.core_type<tc>, window_params = [{transform_indices = @transform_0, window_bounds = array<i64: 8, 64>}, {pipeline_mode = #tpu.pipeline_mode<synchronous>, transform_indices = @transform_1, window_bounds = array<i64: 64, 512>}, {pipeline_mode = #tpu.pipeline_mode<synchronous>, transform_indices = @transform_2, window_bounds = array<i64: 1, 512>}, {pipeline_mode = #tpu.pipeline_mode<synchronous>, transform_indices = @transform_3, window_bounds = array<i64: 512, 128>}, {pipeline_mode = #tpu.pipeline_mode<synchronous>, transform_indices = @transform_4, window_bounds = array<i64: 1, 128>}, {transform_indices = @transform_5, window_bounds = array<i64: 8, 128>}]} {
    %c0 = arith.constant 0 : index
    %c0_0 = arith.constant 0 : index
    %0 = vector.load %arg1[%c0, %c0_0] : memref<8x64xf32, #tpu.memory_space<vmem>>, vector<8x64xf32>
    %1 = arith.truncf %0 : vector<8x64xf32> to vector<8x64xbf16>
    %c0_1 = arith.constant 0 : index
    %c0_2 = arith.constant 0 : index
    %2 = vector.load %arg2[%c0_1, %c0_2] : memref<64x512xbf16, #tpu.memory_space<vmem>>, vector<64x512xbf16>
    %cst = arith.constant dense<0.000000e+00> : vector<8x512xf32>
    %3 = tpu.matmul %1, %2, %cst {dimension_numbers = #tpu.dot_dimension_numbers<[1], [0], [0], [1], [0, 0, 1, 1], [], []>} : vector<8x64xbf16>, vector<64x512xbf16>, vector<8x512xf32> -> vector<8x512xf32>
    %c0_3 = arith.constant 0 : index
    %c0_4 = arith.constant 0 : index
    %4 = vector.load %arg3[%c0_3, %c0_4] : memref<1x512xf32, #tpu.memory_space<vmem>>, vector<1x512xf32>
    %5 = vector.broadcast %4 : vector<1x512xf32> to vector<8x512xf32>
    %6 = arith.addf %3, %5 : vector<8x512xf32>
    %cst_5 = arith.constant 0.000000e+00 : f32
    %7 = vector.broadcast %cst_5 : f32 to vector<8x512xf32>
    %8 = arith.maximumf %6, %7 : vector<8x512xf32>
    %9 = arith.truncf %8 : vector<8x512xf32> to vector<8x512xbf16>
    %c0_6 = arith.constant 0 : index
    %c0_7 = arith.constant 0 : index
    %10 = vector.load %arg4[%c0_6, %c0_7] : memref<512x128xbf16, #tpu.memory_space<vmem>>, vector<512x128xbf16>
    %cst_8 = arith.constant dense<0.000000e+00> : vector<8x128xf32>
    %11 = tpu.matmul %9, %10, %cst_8 {dimension_numbers = #tpu.dot_dimension_numbers<[1], [0], [0], [1], [0, 0, 1, 1], [], []>} : vector<8x512xbf16>, vector<512x128xbf16>, vector<8x128xf32> -> vector<8x128xf32>
    %c0_9 = arith.constant 0 : index
    %c0_10 = arith.constant 0 : index
    %12 = vector.load %arg5[%c0_9, %c0_10] : memref<1x128xf32, #tpu.memory_space<vmem>>, vector<1x128xf32>
    %13 = vector.broadcast %12 : vector<1x128xf32> to vector<8x128xf32>
    %14 = arith.addf %11, %13 : vector<8x128xf32>
    %c0_11 = arith.constant 0 : index
    %c0_12 = arith.constant 0 : index
    %15 = vector.load %arg6[%c0_11, %c0_12] : memref<8x128xf32, #tpu.memory_space<vmem>>, vector<8x128xf32>
    tpu.vector_store %arg6[%c0_11, %c0_12], %14 {strides = array<i32>} : memref<8x128xf32, #tpu.memory_space<vmem>>, vector<8x128xf32>,
    return
  }
  func.func @transform_0(%arg0: i32) -> (i32, i32) {
    %c0_i32 = arith.constant 0 : i32
    %c0_i32_0 = arith.constant 0 : i32
    return %arg0, %c0_i32 : i32, i32
  }
  func.func @transform_1(%arg0: i32) -> (i32, i32) {
    %c0_i32 = arith.constant 0 : i32
    %c0_i32_0 = arith.constant 0 : i32
    %c0_i32_1 = arith.constant 0 : i32
    return %c0_i32, %c0_i32_0 : i32, i32
  }
  func.func @transform_2(%arg0: i32) -> (i32, i32) {
    %c0_i32 = arith.constant 0 : i32
    %c0_i32_0 = arith.constant 0 : i32
    %c0_i32_1 = arith.constant 0 : i32
    return %c0_i32, %c0_i32_0 : i32, i32
  }
  func.func @transform_3(%arg0: i32) -> (i32, i32) {
    %c0_i32 = arith.constant 0 : i32
    %c0_i32_0 = arith.constant 0 : i32
    %c0_i32_1 = arith.constant 0 : i32
    return %c0_i32, %c0_i32_0 : i32, i32
  }
  func.func @transform_4(%arg0: i32) -> (i32, i32) {
    %c0_i32 = arith.constant 0 : i32
    %c0_i32_0 = arith.constant 0 : i32
    %c0_i32_1 = arith.constant 0 : i32
    return %c0_i32, %c0_i32_0 : i32, i32
  }
  func.func @transform_5(%arg0: i32) -> (i32, i32) {
    %c0_i32 = arith.constant 0 : i32
    %c0_i32_0 = arith.constant 0 : i32
    return %arg0, %c0_i32 : i32, i32
  }
}

module attributes {stable_mosaic.version = 11 : i64} {
  func.func @_mlp_kernel(%arg0: i32, %arg1: memref<8x64xf32, #tpu.memory_space<vmem>>, %arg2: memref<64x512xbf16, #tpu.memory_space<vmem>>, %arg3: memref<1x512xf32, #tpu.memory_space<vmem>>, %arg4: memref<512x128xbf16, #tpu.memory_space<vmem>>, %arg5: memref<1x128xf32, #tpu.memory_space<vmem>>, %arg6: memref<8x128xf32, #tpu.memory_space<vmem>>) attributes {dimension_semantics = [#tpu.dimension_semantics<parallel>], iteration_bounds = array<i64: 1>, scalar_prefetch = 0 : i64, scratch_operands = 0 : i64, tpu.core_type = #tpu.core_type<tc>, window_params = [{transform_indices = @transform_0, window_bounds = array<i64: 8, 64>}, {pipeline_mode = #tpu.pipeline_mode<synchronous>, transform_indices = @transform_1, window_bounds = array<i64: 64, 512>}, {pipeline_mode = #tpu.pipeline_mode<synchronous>, transform_indices = @transform_2, window_bounds = array<i64: 1, 512>}, {pipeline_mode = #tpu.pipeline_mode<synchronous>, transform_indices = @transform_3, window_bounds = array<i64: 512, 128>}, {pipeline_mode = #tpu.pipeline_mode<synchronous>, transform_indices = @transform_4, window_bounds = array<i64: 1, 128>}, {transform_indices = @transform_5, window_bounds = array<i64: 8, 128>}]} {
    %c0 = arith.constant 0 : index
    %c0_0 = arith.constant 0 : index
    %0 = vector.load %arg1[%c0, %c0_0] : memref<8x64xf32, #tpu.memory_space<vmem>>, vector<8x64xf32>
    %1 = arith.truncf %0 : vector<8x64xf32> to vector<8x64xbf16>
    %c0_1 = arith.constant 0 : index
    %c0_2 = arith.constant 0 : index
    %2 = vector.load %arg2[%c0_1, %c0_2] : memref<64x512xbf16, #tpu.memory_space<vmem>>, vector<64x512xbf16>
    %cst = arith.constant dense<0.000000e+00> : vector<8x512xf32>
    %3 = tpu.matmul %1, %2, %cst {dimension_numbers = #tpu.dot_dimension_numbers<[1], [0], [0], [1], [0, 0, 1, 1], [], []>} : vector<8x64xbf16>, vector<64x512xbf16>, vector<8x512xf32> -> vector<8x512xf32>
    %c0_3 = arith.constant 0 : index
    %c0_4 = arith.constant 0 : index
    %4 = vector.load %arg3[%c0_3, %c0_4] : memref<1x512xf32, #tpu.memory_space<vmem>>, vector<1x512xf32>
    %5 = vector.broadcast %4 : vector<1x512xf32> to vector<8x512xf32>
    %6 = arith.addf %3, %5 : vector<8x512xf32>
    %cst_5 = arith.constant 0.000000e+00 : f32
    %7 = vector.broadcast %cst_5 : f32 to vector<8x512xf32>
    %8 = arith.maximumf %6, %7 : vector<8x512xf32>
    %9 = arith.truncf %8 : vector<8x512xf32> to vector<8x512xbf16>
    %c0_6 = arith.constant 0 : index
    %c0_7 = arith.constant 0 : index
    %10 = vector.load %arg4[%c0_6, %c0_7] : memref<512x128xbf16, #tpu.memory_space<vmem>>, vector<512x128xbf16>
    %cst_8 = arith.constant dense<0.000000e+00> : vector<8x128xf32>
    %11 = tpu.matmul %9, %10, %cst_8 {dimension_numbers = #tpu.dot_dimension_numbers<[1], [0], [0], [1], [0, 0, 1, 1], [], []>} : vector<8x512xbf16>, vector<512x128xbf16>, vector<8x128xf32> -> vector<8x128xf32>
    %c0_9 = arith.constant 0 : index
    %c0_10 = arith.constant 0 : index
    %12 = vector.load %arg5[%c0_9, %c0_10] : memref<1x128xf32, #tpu.memory_space<vmem>>, vector<1x128xf32>
    %13 = vector.broadcast %12 : vector<1x128xf32> to vector<8x128xf32>
    %14 = arith.addf %11, %13 : vector<8x128xf32>
    %c0_11 = arith.constant 0 : index
    %c0_12 = arith.constant 0 : index
    %15 = vector.load %arg6[%c0_11, %c0_12] : memref<8x128xf32, #tpu.memory_space<vmem>>, vector<8x128xf32>
    tpu.vector_store %arg6[%c0_11, %c0_12], %14 {strides = array<i32>} : memref<8x128xf32, #tpu.memory_space<vmem>>, vector<8x128xf32>,
    return
  }
  func.func @transform_0(%arg0: i32) -> (i32, i32) {
    %c0_i32 = arith.constant 0 : i32
    %c0_i32_0 = arith.constant 0 : i32
    return %arg0, %c0_i32 : i32, i32
  }
  func.func @transform_1(%arg0: i32) -> (i32, i32) {
    %c0_i32 = arith.constant 0 : i32
    %c0_i32_0 = arith.constant 0 : i32
    %c0_i32_1 = arith.constant 0 : i32
    return %c0_i32, %c0_i32_0 : i32, i32
  }
  func.func @transform_2(%arg0: i32) -> (i32, i32) {
    %c0_i32 = arith.constant 0 : i32
    %c0_i32_0 = arith.constant 0 : i32
    %c0_i32_1 = arith.constant 0 : i32
    return %c0_i32, %c0_i32_0 : i32, i32
  }
  func.func @transform_3(%arg0: i32) -> (i32, i32) {
    %c0_i32 = arith.constant 0 : i32
    %c0_i32_0 = arith.constant 0 : i32
    %c0_i32_1 = arith.constant 0 : i32
    return %c0_i32, %c0_i32_0 : i32, i32
  }
  func.func @transform_4(%arg0: i32) -> (i32, i32) {
    %c0_i32 = arith.constant 0 : i32
    %c0_i32_0 = arith.constant 0 : i32
    %c0_i32_1 = arith.constant 0 : i32
    return %c0_i32, %c0_i32_0 : i32, i32
  }
  func.func @transform_5(%arg0: i32) -> (i32, i32) {
    %c0_i32 = arith.constant 0 : i32
    %c0_i32_0 = arith.constant 0 : i32
    return %arg0, %c0_i32 : i32, i32
  }
}

</mosaic_0001>

<llo_original>
// kernel: tpu_custom_call.1
$region0: #{tpu_custom_call.1}
  #allocation0 [shape = 'u32[]', space=smem, size = 0x4, offset = 0x4, fixed_abs, tag = 'smem constant byte address 0x4 - core index']
  #allocation1 [shape = 'u32[144,128]{1,0:T(1,128)}', space=vmem, size = 0x12000, scoped, tag = 'internal scratch']
  %s0 = inlined_call_operand.hbm [shape: f32[8,64], index: 0, kind: input, shape index: {}]
  %s1 = inlined_call_operand.hbm [shape: bf16[64,512], index: 1, kind: input, shape index: {}]
  %s2 = inlined_call_operand.vmem [shape: f32[1,512], index: 2, kind: input, shape index: {}]
  %s3 = inlined_call_operand.hbm [shape: bf16[512,128], index: 3, kind: input, shape index: {}]
  %s4 = inlined_call_operand.vmem [shape: f32[1,128], index: 4, kind: input, shape index: {}]
  %s5 = inlined_call_operand.hbm [shape: f32[8,128], index: 5, kind: output, shape index: {}]
  %s6 = sld [smem:[#allocation0]]
  $region42: #{tpu_custom_call.1} parent=0
    _
  %s8 = ssub.s32 1, %s6
  %s9 = scalar_select 0, %s8, %s6
  $region1: #{tpu_custom_call.1} parent=0
    #allocation2 [shape = 'u8[4096]{0}', space=vmem, size = 0x1000, scoped, tag = 'input window, operand 0, single buffered']
    #allocation3 [shape = 's32[1]{0}', space=sflag, size = 0x4, scoped, tag = 'scoped memory for tpu_custom_call.1']
    #allocation4 [shape = 's32[1]{0}', space=sflag, size = 0x4, scoped, tag = 'scoped memory for tpu_custom_call.1']
    #allocation5 [shape = 'u8[65536]{0}', space=vmem, size = 0x10000, scoped, tag = 'input window, operand 1, single buffered']
    #allocation6 [shape = 's32[1]{0}', space=sflag, size = 0x4, scoped, tag = 'scoped memory for tpu_custom_call.1']
    #allocation7 [shape = 'u8[131072]{0}', space=vmem, size = 0x20000, scoped, tag = 'input window, operand 3, single buffered']
    #allocation8 [shape = 'u8[4096]{0}', space=vmem, size = 0x1000, scoped, tag = 'output window, operand 0, single buffered']
    %10 = vsyncpa [#allocation3], 0
    %11 = vsyncpa [#allocation6], 0
    %12 = vsyncpa [#allocation4], 0
    // Predicated region
    $region2: #{tpu_custom_call.1} parent=1 // pred_check
      _
    $region3: #{tpu_custom_call.1} parent=1 // pred_check_branch
      %14 = sbr.rel (0) target = $region5
    $region4: #{tpu_custom_call.1} parent=1 // pred_region
      %s16 = ssub.s32 128, 128
      %17 = vsyncadd [#allocation3], %s16
      %s19 = sshll.u32 [#allocation2], 4
      %s20 = int_to_ptr.vmem [resolvable:$true] %s19
      %22 = dma.hbm_to_vmem [thread:$0]  %s0, 128, %s20, [#allocation3]
    $region5: #{tpu_custom_call.1} parent=1 // pred_fallthru
      _
    // Predicated region
    $region6: #{tpu_custom_call.1} parent=1 // pred_check
      _
    $region7: #{tpu_custom_call.1} parent=1 // pred_check_branch
      %24 = sbr.rel (0) target = $region9
    $region8: #{tpu_custom_call.1} parent=1 // pred_region
      %s26 = ssub.s32 2048, 2048
      %27 = vsyncadd [#allocation6], %s26
      %s28 = sshll.u32 [#allocation5], 4
      %s29 = int_to_ptr.vmem [resolvable:$true] %s28
      %34 = dma.hbm_to_vmem [thread:$0]  %s1, 2048, %s29, [#allocation6], 256, 256, 16
    $region9: #{tpu_custom_call.1} parent=1 // pred_fallthru
      _
    // Predicated region
    $region10: #{tpu_custom_call.1} parent=1 // pred_check
      _
    $region11: #{tpu_custom_call.1} parent=1 // pred_check_branch
      %36 = sbr.rel (0) target = $region13
    $region12: #{tpu_custom_call.1} parent=1 // pred_region
      _
    $region13: #{tpu_custom_call.1} parent=1 // pred_fallthru
      _
    // Predicated region
    $region14: #{tpu_custom_call.1} parent=1 // pred_check
      _
    $region15: #{tpu_custom_call.1} parent=1 // pred_check_branch
      %38 = sbr.rel (0) target = $region17
    $region16: #{tpu_custom_call.1} parent=1 // pred_region
      %s40 = ssub.s32 4096, 4096
      %41 = vsyncadd [#allocation6], %s40
      %s42 = sshll.u32 [#allocation7], 4
      %s43 = int_to_ptr.vmem [resolvable:$true] %s42
      %48 = dma.hbm_to_vmem [thread:$0]  %s3, 4096, %s43, [#allocation6], 64, 64, 4
    $region17: #{tpu_custom_call.1} parent=1 // pred_fallthru
      _
    // Predicated region
    $region18: #{tpu_custom_call.1} parent=1 // pred_check
      _
    $region19: #{tpu_custom_call.1} parent=1 // pred_check_branch
      %50 = sbr.rel (0) target = $region21
    $region20: #{tpu_custom_call.1} parent=1 // pred_region
      _
    $region21: #{tpu_custom_call.1} parent=1 // pred_fallthru
      _
    // Predicated region
    $region22: #{tpu_custom_call.1} parent=1 // pred_check
      _
    $region23: #{tpu_custom_call.1} parent=1 // pred_check_branch
      %52 = sbr.rel (0) target = $region25
    $region24: #{tpu_custom_call.1} parent=1 // pred_region
      %53 = dma.done [#allocation3], 128
    $region25: #{tpu_custom_call.1} parent=1 // pred_fallthru
      _
    // Predicated region
    $region26: #{tpu_custom_call.1} parent=1 // pred_check
      _
    $region27: #{tpu_custom_call.1} parent=1 // pred_check_branch
      %55 = sbr.rel (0) target = $region29
    $region28: #{tpu_custom_call.1} parent=1 // pred_region
      %56 = dma.done [#allocation6], 2048
    $region29: #{tpu_custom_call.1} parent=1 // pred_fallthru
      _
    // Predicated region
    $region30: #{tpu_custom_call.1} parent=1 // pred_check
      _
    $region31: #{tpu_custom_call.1} parent=1 // pred_check_branch
      %58 = sbr.rel (0) target = $region33
    $region32: #{tpu_custom_call.1} parent=1 // pred_region
      %59 = dma.done [#allocation6], 4096
    $region33: #{tpu_custom_call.1} parent=1 // pred_fallthru
      _
    %v61 = vld [vmem:[#allocation2] sm:$0xff]
    %v62 = vpack.c.bf16 %v61, %v61
    %v63 = vld [vmem:[#allocation5] sm:$0xff]
    %v64 = vld [vmem:[#allocation5 + $0x8] sm:$0xff]
    %v65 = vld [vmem:[#allocation5 + $0x10] sm:$0xff]
    %v66 = vld [vmem:[#allocation5 + $0x18] sm:$0xff]
    %v67 = vld [vmem:[#allocation5 + $0x20] sm:$0xff]
    %v68 = vld [vmem:[#allocation5 + $0x28] sm:$0xff]
    %v69 = vld [vmem:[#allocation5 + $0x30] sm:$0xff]
    %v70 = vld [vmem:[#allocation5 + $0x38] sm:$0xff]
    %v71 = vld [vmem:[#allocation5 + $0x40] sm:$0xff]
    %v72 = vld [vmem:[#allocation5 + $0x48] sm:$0xff]
    %v73 = vld [vmem:[#allocation5 + $0x50] sm:$0xff]
    %v74 = vld [vmem:[#allocation5 + $0x58] sm:$0xff]
    %v75 = vld [vmem:[#allocation5 + $0x60] sm:$0xff]
    %v76 = vld [vmem:[#allocation5 + $0x68] sm:$0xff]
    %v77 = vld [vmem:[#allocation5 + $0x70] sm:$0xff]
    %v78 = vld [vmem:[#allocation5 + $0x78] sm:$0xff]
    %v79 = vld [vmem:[%s2] sm:$0xf]
    %v81 = vlaneseq
    %v82 = vshrl.u32 %v81, 7
    %v83 = vsub.s32 0, %v82
    %v84 = vrot.slane %v79, %v83
    %v85 = vlaneseq
    %v86 = vshrl.u32 %v85, 7
    %v87 = vsub.s32 1, %v86
    %v88 = vrot.slane %v79, %v87
    %v89 = vlaneseq
    %v90 = vshrl.u32 %v89, 7
    %v91 = vsub.s32 2, %v90
    %v92 = vrot.slane %v79, %v91
    %v93 = vlaneseq
    %v94 = vshrl.u32 %v93, 7
    %v95 = vsub.s32 3, %v94
    %v96 = vrot.slane %v79, %v95
    %v117 = vunpack.c.l.b16 %v63
    %v118 = vunpack.c.h.b16 %v63
    %v119 = vunpack.c.l.b16 %v64
    %v120 = vunpack.c.h.b16 %v64
    %v121 = vunpack.c.l.b16 %v65
    %v122 = vunpack.c.h.b16 %v65
    %v123 = vunpack.c.l.b16 %v66
    %v124 = vunpack.c.h.b16 %v66
    %v125 = vunpack.c.l.b16 %v67
    %v126 = vunpack.c.h.b16 %v67
    %v127 = vunpack.c.l.b16 %v68
    %v128 = vunpack.c.h.b16 %v68
    %v129 = vunpack.c.l.b16 %v69
    %v130 = vunpack.c.h.b16 %v69
    %v131 = vunpack.c.l.b16 %v70
    %v132 = vunpack.c.h.b16 %v70
    %v133 = vunpack.c.l.b16 %v71
    %v134 = vunpack.c.h.b16 %v71
    %v135 = vunpack.c.l.b16 %v72
    %v136 = vunpack.c.h.b16 %v72
    %v137 = vunpack.c.l.b16 %v73
    %v138 = vunpack.c.h.b16 %v73
    %v139 = vunpack.c.l.b16 %v74
    %v140 = vunpack.c.h.b16 %v74
    %v141 = vunpack.c.l.b16 %v75
    %v142 = vunpack.c.h.b16 %v75
    %v143 = vunpack.c.l.b16 %v76
    %v144 = vunpack.c.h.b16 %v76
    %v145 = vunpack.c.l.b16 %v77
    %v146 = vunpack.c.h.b16 %v77
    %v147 = vunpack.c.l.b16 %v78
    %v148 = vunpack.c.h.b16 %v78
    %v149 = vpack.c.b16 %v121, %v117
    %v150 = vpack.c.b16 %v122, %v118
    %v151 = vpack.c.b16 %v123, %v119
    %v152 = vpack.c.b16 %v124, %v120
    %v153 = vpack.c.b16 %v129, %v125
    %v154 = vpack.c.b16 %v130, %v126
    %v155 = vpack.c.b16 %v131, %v127
    %v156 = vpack.c.b16 %v132, %v128
    %v157 = vpack.c.b16 %v137, %v133
    %v158 = vpack.c.b16 %v138, %v134
    %v159 = vpack.c.b16 %v139, %v135
    %v160 = vpack.c.b16 %v140, %v136
    %v161 = vpack.c.b16 %v145, %v141
    %v162 = vpack.c.b16 %v146, %v142
    %v163 = vpack.c.b16 %v147, %v143
    %v164 = vpack.c.b16 %v148, %v144
    %vm181 = vcmask 523264
    %v183 = vsel %vm181, %v62, 0
    %185 = vmatprep.subr.bf16.mxu0 %v150
    %186 = vmatpush1.bf16.msra.mxu0 %v149
    %187 = vmatprep.subr.bf16.mxu0 %v154
    %188 = vmatpush1.bf16.msra.mxu0 %v153
    %189 = vmatprep.subr.bf16.mxu0 %v158
    %190 = vmatpush1.bf16.msra.mxu0 %v157
    %191 = vmatprep.subr.bf16.mxu0 %v162
    %192 = vmatpush1.bf16.msra.mxu0 %v161
    %193 = vmatprep.subr.bf16.mxu0 0
    %194 = vmatpush1.bf16.msra.mxu0 0
    %195 = vmatprep.subr.bf16.mxu0 0
    %196 = vmatpush1.bf16.msra.mxu0 0
    %197 = vmatprep.subr.bf16.mxu0 0
    %198 = vmatpush1.bf16.msra.mxu0 0
    %199 = vmatprep.subr.bf16.mxu0 0
    %200 = vmatpush1.bf16.msra.mxu0 0
    %201 = vmatprep.subr.bf16.mxu0 0
    %202 = vmatpush1.bf16.msra.mxu0 0
    %203 = vmatprep.subr.bf16.mxu0 0
    %204 = vmatpush1.bf16.msra.mxu0 0
    %205 = vmatprep.subr.bf16.mxu0 0
    %206 = vmatpush1.bf16.msra.mxu0 0
    %207 = vmatprep.subr.bf16.mxu0 0
    %208 = vmatpush1.bf16.msra.mxu0 0
    %209 = vmatprep.subr.bf16.mxu0 0
    %210 = vmatpush1.bf16.msra.mxu0 0
    %211 = vmatprep.subr.bf16.mxu0 0
    %212 = vmatpush1.bf16.msra.mxu0 0
    %213 = vmatprep.subr.bf16.mxu0 0
    %214 = vmatpush1.bf16.msra.mxu0 0
    %215 = vmatprep.subr.bf16.mxu0 0
    %216 = vmatpush1.bf16.msra.mxu0 0
    %217 = vmatprep.mubr.bf16.mxu0 0
    %218 = vmatmul.mubr.bf16.gmra.mrb[0].mxu0 %v183
    %v219 = vpop.f32.mrb[0].mxu0
    %v220 = vadd.f32 %v84, %v219
    %v221 = vpop.f32.mrb[0].mxu0
    %v222 = vadd.f32 %v88, %v221
    %v223 = vpop.f32.mrb[0].mxu0
    %v224 = vpop.f32.mrb[0].mxu0
    %225 = vdwg.mxu0
    %226 = vmatprep.subr.bf16.mxu0 %v152
    %227 = vmatpush1.bf16.msra.mxu0 %v151
    %228 = vmatprep.subr.bf16.mxu0 %v156
    %229 = vmatpush1.bf16.msra.mxu0 %v155
    %230 = vmatprep.subr.bf16.mxu0 %v160
    %231 = vmatpush1.bf16.msra.mxu0 %v159
    %232 = vmatprep.subr.bf16.mxu0 %v164
    %233 = vmatpush1.bf16.msra.mxu0 %v163
    %234 = vmatprep.subr.bf16.mxu0 0
    %235 = vmatpush1.bf16.msra.mxu0 0
    %236 = vmatprep.subr.bf16.mxu0 0
    %237 = vmatpush1.bf16.msra.mxu0 0
    %238 = vmatprep.subr.bf16.mxu0 0
    %239 = vmatpush1.bf16.msra.mxu0 0
    %240 = vmatprep.subr.bf16.mxu0 0
    %241 = vmatpush1.bf16.msra.mxu0 0
    %242 = vmatprep.subr.bf16.mxu0 0
    %243 = vmatpush1.bf16.msra.mxu0 0
    %244 = vmatprep.subr.bf16.mxu0 0
    %245 = vmatpush1.bf16.msra.mxu0 0
    %246 = vmatprep.subr.bf16.mxu0 0
    %247 = vmatpush1.bf16.msra.mxu0 0
    %248 = vmatprep.subr.bf16.mxu0 0
    %249 = vmatpush1.bf16.msra.mxu0 0
    %250 = vmatprep.subr.bf16.mxu0 0
    %251 = vmatpush1.bf16.msra.mxu0 0
    %252 = vmatprep.subr.bf16.mxu0 0
    %253 = vmatpush1.bf16.msra.mxu0 0
    %254 = vmatprep.subr.bf16.mxu0 0
    %255 = vmatpush1.bf16.msra.mxu0 0
    %256 = vmatprep.subr.bf16.mxu0 0
    %257 = vmatpush1.bf16.msra.mxu0 0
    %258 = vmatprep.mubr.bf16.mxu0 0
    %259 = vmatmul.mubr.bf16.gmra.mrb[0].mxu0 %v183
    %v260 = vpop.f32.mrb[0].mxu0
    %v261 = vadd.f32 %v92, %v260
    %v262 = vpop.f32.mrb[0].mxu0
    %v263 = vadd.f32 %v96, %v262
    %v264 = vpop.f32.mrb[0].mxu0
    %v265 = vpop.f32.mrb[0].mxu0
    %266 = vdwg.mxu0
    %v267 = vmax.f32 %v220, 0.0
    %v268 = vmax.f32 %v222, 0.0
    %v269 = vmax.f32 %v261, 0.0
    %v270 = vmax.f32 %v263, 0.0
    %v271 = vpack.c.bf16 %v267, %v267
    %v272 = vpack.c.bf16 %v268, %v268
    %v273 = vpack.c.bf16 %v269, %v269
    %v274 = vpack.c.bf16 %v270, %v270
    %v275 = vld [vmem:[#allocation7] sm:$0xf]
    %v276 = vld [vmem:[#allocation7 + $0x4] sm:$0xf]
    %v277 = vld [vmem:[#allocation7 + $0x8] sm:$0xf]
    %v278 = vld [vmem:[#allocation7 + $0xc] sm:$0xf]
    %v279 = vld [vmem:[#allocation7 + $0x10] sm:$0xf]
    %v280 = vld [vmem:[#allocation7 + $0x14] sm:$0xf]
    %v281 = vld [vmem:[#allocation7 + $0x18] sm:$0xf]
    %v282 = vld [vmem:[#allocation7 + $0x1c] sm:$0xf]
    %v283 = vld [vmem:[#allocation7 + $0x20] sm:$0xf]
    %v284 = vld [vmem:[#allocation7 + $0x24] sm:$0xf]
    %v285 = vld [vmem:[#allocation7 + $0x28] sm:$0xf]
    %v286 = vld [vmem:[#allocation7 + $0x2c] sm:$0xf]
    %v287 = vld [vmem:[#allocation7 + $0x30] sm:$0xf]
    %v288 = vld [vmem:[#allocation7 + $0x34] sm:$0xf]
    %v289 = vld [vmem:[#allocation7 + $0x38] sm:$0xf]
    %v290 = vld [vmem:[#allocation7 + $0x3c] sm:$0xf]
    %v291 = vld [vmem:[#allocation7 + $0x40] sm:$0xf]
    %v292 = vld [vmem:[#allocation7 + $0x44] sm:$0xf]
    %v293 = vld [vmem:[#allocation7 + $0x48] sm:$0xf]
    %v294 = vld [vmem:[#allocation7 + $0x4c] sm:$0xf]
    %v295 = vld [vmem:[#allocation7 + $0x50] sm:$0xf]
    %v296 = vld [vmem:[#allocation7 + $0x54] sm:$0xf]
    %v297 = vld [vmem:[#allocation7 + $0x58] sm:$0xf]
    %v298 = vld [vmem:[#allocation7 + $0x5c] sm:$0xf]
    %v299 = vld [vmem:[#allocation7 + $0x60] sm:$0xf]
    %v300 = vld [vmem:[#allocation7 + $0x64] sm:$0xf]
    %v301 = vld [vmem:[#allocation7 + $0x68] sm:$0xf]
    %v302 = vld [vmem:[#allocation7 + $0x6c] sm:$0xf]
    %v303 = vld [vmem:[#allocation7 + $0x70] sm:$0xf]
    %v304 = vld [vmem:[#allocation7 + $0x74] sm:$0xf]
    %v305 = vld [vmem:[#allocation7 + $0x78] sm:$0xf]
    %v306 = vld [vmem:[#allocation7 + $0x7c] sm:$0xf]
    %v307 = vld [vmem:[#allocation7 + $0x80] sm:$0xf]
    %v308 = vld [vmem:[#allocation7 + $0x84] sm:$0xf]
    %v309 = vld [vmem:[#allocation7 + $0x88] sm:$0xf]
    %v310 = vld [vmem:[#allocation7 + $0x8c] sm:$0xf]
    %v311 = vld [vmem:[#allocation7 + $0x90] sm:$0xf]
    %v312 = vld [vmem:[#allocation7 + $0x94] sm:$0xf]
    %v313 = vld [vmem:[#allocation7 + $0x98] sm:$0xf]
    %v314 = vld [vmem:[#allocation7 + $0x9c] sm:$0xf]
    %v315 = vld [vmem:[#allocation7 + $0xa0] sm:$0xf]
    %v316 = vld [vmem:[#allocation7 + $0xa4] sm:$0xf]
    %v317 = vld [vmem:[#allocation7 + $0xa8] sm:$0xf]
    %v318 = vld [vmem:[#allocation7 + $0xac] sm:$0xf]
    %v319 = vld [vmem:[#allocation7 + $0xb0] sm:$0xf]
    %v320 = vld [vmem:[#allocation7 + $0xb4] sm:$0xf]
    %v321 = vld [vmem:[#allocation7 + $0xb8] sm:$0xf]
    %v322 = vld [vmem:[#allocation7 + $0xbc] sm:$0xf]
    %v323 = vld [vmem:[#allocation7 + $0xc0] sm:$0xf]
    %v324 = vld [vmem:[#allocation7 + $0xc4] sm:$0xf]
    %v325 = vld [vmem:[#allocation7 + $0xc8] sm:$0xf]
    %v326 = vld [vmem:[#allocation7 + $0xcc] sm:$0xf]
    %v327 = vld [vmem:[#allocation7 + $0xd0] sm:$0xf]
    %v328 = vld [vmem:[#allocation7 + $0xd4] sm:$0xf]
    %v329 = vld [vmem:[#allocation7 + $0xd8] sm:$0xf]
    %v330 = vld [vmem:[#allocation7 + $0xdc] sm:$0xf]
    %v331 = vld [vmem:[#allocation7 + $0xe0] sm:$0xf]
    %v332 = vld [vmem:[#allocation7 + $0xe4] sm:$0xf]
    %v333 = vld [vmem:[#allocation7 + $0xe8] sm:$0xf]
    %v334 = vld [vmem:[#allocation7 + $0xec] sm:$0xf]
    %v335 = vld [vmem:[#allocation7 + $0xf0] sm:$0xf]
    %v336 = vld [vmem:[#allocation7 + $0xf4] sm:$0xf]
    %v337 = vld [vmem:[#allocation7 + $0xf8] sm:$0xf]
    %v338 = vld [vmem:[#allocation7 + $0xfc] sm:$0xf]
    %v339 = vld [vmem:[%s4] sm:$0x1]
    %v341 = vlaneseq
    %v342 = vshrl.u32 %v341, 7
    %v343 = vsub.s32 0, %v342
    %v344 = vrot.slane %v339, %v343
    %v410 = vunpack.c.l.b16 %v275
    %v411 = vunpack.c.l.b16 %v276
    %v412 = vunpack.c.l.b16 %v277
    %v413 = vunpack.c.l.b16 %v278
    %v414 = vunpack.c.l.b16 %v279
    %v415 = vunpack.c.l.b16 %v280
    %v416 = vunpack.c.l.b16 %v281
    %v417 = vunpack.c.l.b16 %v282
    %v418 = vunpack.c.l.b16 %v283
    %v419 = vunpack.c.l.b16 %v284
    %v420 = vunpack.c.l.b16 %v285
    %v421 = vunpack.c.l.b16 %v286
    %v422 = vunpack.c.l.b16 %v287
    %v423 = vunpack.c.l.b16 %v288
    %v424 = vunpack.c.l.b16 %v289
    %v425 = vunpack.c.l.b16 %v290
    %v426 = vunpack.c.l.b16 %v291
    %v427 = vunpack.c.l.b16 %v292
    %v428 = vunpack.c.l.b16 %v293
    %v429 = vunpack.c.l.b16 %v294
    %v430 = vunpack.c.l.b16 %v295
    %v431 = vunpack.c.l.b16 %v296
    %v432 = vunpack.c.l.b16 %v297
    %v433 = vunpack.c.l.b16 %v298
    %v434 = vunpack.c.l.b16 %v299
    %v435 = vunpack.c.l.b16 %v300
    %v436 = vunpack.c.l.b16 %v301
    %v437 = vunpack.c.l.b16 %v302
    %v438 = vunpack.c.l.b16 %v303
    %v439 = vunpack.c.l.b16 %v304
    %v440 = vunpack.c.l.b16 %v305
    %v441 = vunpack.c.l.b16 %v306
    %v442 = vunpack.c.l.b16 %v307
    %v443 = vunpack.c.l.b16 %v308
    %v444 = vunpack.c.l.b16 %v309
    %v445 = vunpack.c.l.b16 %v310
    %v446 = vunpack.c.l.b16 %v311
    %v447 = vunpack.c.l.b16 %v312
    %v448 = vunpack.c.l.b16 %v313
    %v449 = vunpack.c.l.b16 %v314
    %v450 = vunpack.c.l.b16 %v315
    %v451 = vunpack.c.l.b16 %v316
    %v452 = vunpack.c.l.b16 %v317
    %v453 = vunpack.c.l.b16 %v318
    %v454 = vunpack.c.l.b16 %v319
    %v455 = vunpack.c.l.b16 %v320
    %v456 = vunpack.c.l.b16 %v321
    %v457 = vunpack.c.l.b16 %v322
    %v458 = vunpack.c.l.b16 %v323
    %v459 = vunpack.c.l.b16 %v324
    %v460 = vunpack.c.l.b16 %v325
    %v461 = vunpack.c.l.b16 %v326
    %v462 = vunpack.c.l.b16 %v327
    %v463 = vunpack.c.l.b16 %v328
    %v464 = vunpack.c.l.b16 %v329
    %v465 = vunpack.c.l.b16 %v330
    %v466 = vunpack.c.l.b16 %v331
    %v467 = vunpack.c.l.b16 %v332
    %v468 = vunpack.c.l.b16 %v333
    %v469 = vunpack.c.l.b16 %v334
    %v470 = vunpack.c.l.b16 %v335
    %v471 = vunpack.c.l.b16 %v336
    %v472 = vunpack.c.l.b16 %v337
    %v473 = vunpack.c.l.b16 %v338
    %v474 = vpack.c.b16 %v411, %v410
    %v475 = vpack.c.b16 %v413, %v412
    %v476 = vpack.c.b16 %v415, %v414
    %v477 = vpack.c.b16 %v417, %v416
    %v478 = vpack.c.b16 %v419, %v418
    %v479 = vpack.c.b16 %v421, %v420
    %v480 = vpack.c.b16 %v423, %v422
    %v481 = vpack.c.b16 %v425, %v424
    %v482 = vpack.c.b16 %v427, %v426
    %v483 = vpack.c.b16 %v429, %v428
    %v484 = vpack.c.b16 %v431, %v430
    %v485 = vpack.c.b16 %v433, %v432
    %v486 = vpack.c.b16 %v435, %v434
    %v487 = vpack.c.b16 %v437, %v436
    %v488 = vpack.c.b16 %v439, %v438
    %v489 = vpack.c.b16 %v441, %v440
    %v490 = vpack.c.b16 %v443, %v442
    %v491 = vpack.c.b16 %v445, %v444
    %v492 = vpack.c.b16 %v447, %v446
    %v493 = vpack.c.b16 %v449, %v448
    %v494 = vpack.c.b16 %v451, %v450
    %v495 = vpack.c.b16 %v453, %v452
    %v496 = vpack.c.b16 %v455, %v454
    %v497 = vpack.c.b16 %v457, %v456
    %v498 = vpack.c.b16 %v459, %v458
    %v499 = vpack.c.b16 %v461, %v460
    %v500 = vpack.c.b16 %v463, %v462
    %v501 = vpack.c.b16 %v465, %v464
    %v502 = vpack.c.b16 %v467, %v466
    %v503 = vpack.c.b16 %v469, %v468
    %v504 = vpack.c.b16 %v471, %v470
    %v505 = vpack.c.b16 %v473, %v472
    %538 = vmatprep.subr.bf16.mxu0 0
    %539 = vmatpush1.bf16.msra.mxu0 %v474
    %540 = vmatprep.subr.bf16.mxu0 0
    %541 = vmatpush1.bf16.msra.mxu0 %v475
    %542 = vmatprep.subr.bf16.mxu0 0
    %543 = vmatpush1.bf16.msra.mxu0 %v476
    %544 = vmatprep.subr.bf16.mxu0 0
    %545 = vmatpush1.bf16.msra.mxu0 %v477
    %546 = vmatprep.subr.bf16.mxu0 0
    %547 = vmatpush1.bf16.msra.mxu0 %v478
    %548 = vmatprep.subr.bf16.mxu0 0
    %549 = vmatpush1.bf16.msra.mxu0 %v479
    %550 = vmatprep.subr.bf16.mxu0 0
    %551 = vmatpush1.bf16.msra.mxu0 %v480
    %552 = vmatprep.subr.bf16.mxu0 0
    %553 = vmatpush1.bf16.msra.mxu0 %v481
    %554 = vmatprep.subr.bf16.mxu0 0
    %555 = vmatpush1.bf16.msra.mxu0 %v482
    %556 = vmatprep.subr.bf16.mxu0 0
    %557 = vmatpush1.bf16.msra.mxu0 %v483
    %558 = vmatprep.subr.bf16.mxu0 0
    %559 = vmatpush1.bf16.msra.mxu0 %v484
    %560 = vmatprep.subr.bf16.mxu0 0
    %561 = vmatpush1.bf16.msra.mxu0 %v485
    %562 = vmatprep.subr.bf16.mxu0 0
    %563 = vmatpush1.bf16.msra.mxu0 %v486
    %564 = vmatprep.subr.bf16.mxu0 0
    %565 = vmatpush1.bf16.msra.mxu0 %v487
    %566 = vmatprep.subr.bf16.mxu0 0
    %567 = vmatpush1.bf16.msra.mxu0 %v488
    %568 = vmatprep.subr.bf16.mxu0 0
    %569 = vmatpush1.bf16.msra.mxu0 %v489
    %570 = vmatprep.mubr.bf16.mxu0 %v272
    %571 = vmatmul.mubr.bf16.gmra.mrb[0].mxu0 %v271
    %v572 = vpop.f32.mrb[0].mxu0
    %v573 = vadd.f32 %v344, %v572
    %v574 = vpop.f32.mrb[0].mxu0
    %v575 = vpop.f32.mrb[0].mxu0
    %v576 = vpop.f32.mrb[0].mxu0
    %577 = vdwg.mxu0
    %578 = vmatprep.subr.bf16.mxu0 0
    %579 = vmatpush1.bf16.msra.mxu0 %v490
    %580 = vmatprep.subr.bf16.mxu0 0
    %581 = vmatpush1.bf16.msra.mxu0 %v491
    %582 = vmatprep.subr.bf16.mxu0 0
    %583 = vmatpush1.bf16.msra.mxu0 %v492
    %584 = vmatprep.subr.bf16.mxu0 0
    %585 = vmatpush1.bf16.msra.mxu0 %v493
    %586 = vmatprep.subr.bf16.mxu0 0
    %587 = vmatpush1.bf16.msra.mxu0 %v494
    %588 = vmatprep.subr.bf16.mxu0 0
    %589 = vmatpush1.bf16.msra.mxu0 %v495
    %590 = vmatprep.subr.bf16.mxu0 0
    %591 = vmatpush1.bf16.msra.mxu0 %v496
    %592 = vmatprep.subr.bf16.mxu0 0
    %593 = vmatpush1.bf16.msra.mxu0 %v497
    %594 = vmatprep.subr.bf16.mxu0 0
    %595 = vmatpush1.bf16.msra.mxu0 %v498
    %596 = vmatprep.subr.bf16.mxu0 0
    %597 = vmatpush1.bf16.msra.mxu0 %v499
    %598 = vmatprep.subr.bf16.mxu0 0
    %599 = vmatpush1.bf16.msra.mxu0 %v500
    %600 = vmatprep.subr.bf16.mxu0 0
    %601 = vmatpush1.bf16.msra.mxu0 %v501
    %602 = vmatprep.subr.bf16.mxu0 0
    %603 = vmatpush1.bf16.msra.mxu0 %v502
    %604 = vmatprep.subr.bf16.mxu0 0
    %605 = vmatpush1.bf16.msra.mxu0 %v503
    %606 = vmatprep.subr.bf16.mxu0 0
    %607 = vmatpush1.bf16.msra.mxu0 %v504
    %608 = vmatprep.subr.bf16.mxu0 0
    %609 = vmatpush1.bf16.msra.mxu0 %v505
    %610 = vmatprep.mubr.bf16.mxu0 %v274
    %611 = vmatmul.mubr.bf16.gmra.mrb[0].mxu0 %v273
    %v612 = vpop.f32.mrb[0].mxu0
    %v613 = vadd.f32 %v573, %v612
    %v614 = vpop.f32.mrb[0].mxu0
    %v615 = vpop.f32.mrb[0].mxu0
    %v616 = vpop.f32.mrb[0].mxu0
    %617 = vdwg.mxu0
    %618 = vst [vmem:[#allocation8] sm:$0xff] %v613
    // Predicated region
    $region34: #{tpu_custom_call.1} parent=1 // pred_check
      _
    $region35: #{tpu_custom_call.1} parent=1 // pred_check_branch
      %620 = sbr.rel (0) target = $region37
    $region36: #{tpu_custom_call.1} parent=1 // pred_region
      %s622 = ssub.s32 128, 128
      %623 = vsyncadd [#allocation4], %s622
      %s625 = sshll.u32 [#allocation8], 4
      %s626 = int_to_ptr.vmem [resolvable:$true] %s625
      %628 = dma.vmem_to_hbm [thread:$0]  %s626, 128, %s5, [#allocation4]
    $region37: #{tpu_custom_call.1} parent=1 // pred_fallthru
      _
    // Predicated region
    $region38: #{tpu_custom_call.1} parent=1 // pred_check
      _
    $region39: #{tpu_custom_call.1} parent=1 // pred_check_branch
      %630 = sbr.rel (0) target = $region41
    $region40: #{tpu_custom_call.1} parent=1 // pred_region
      %631 = dma.done [#allocation4], 128
    $region41: #{tpu_custom_call.1} parent=1 // pred_fallthru
      _
    %632 = vsyncpa [#allocation3], 1
    %633 = vsyncpa [#allocation6], 1
    %634 = vsyncpa [#allocation4], 1

// kernel: tpu_custom_call.1
$region0: #{tpu_custom_call.1}
  #allocation0 [shape = 'u32[]', space=smem, size = 0x4, offset = 0x4, fixed_abs, tag = 'smem constant byte address 0x4 - core index']
  #allocation1 [shape = 'u32[144,128]{1,0:T(1,128)}', space=vmem, size = 0x12000, scoped, tag = 'internal scratch']
  %s0 = inlined_call_operand.hbm [shape: f32[8,64], index: 0, kind: input, shape index: {}]
  %s1 = inlined_call_operand.hbm [shape: bf16[64,512], index: 1, kind: input, shape index: {}]
  %s2 = inlined_call_operand.vmem [shape: f32[1,512], index: 2, kind: input, shape index: {}]
  %s3 = inlined_call_operand.hbm [shape: bf16[512,128], index: 3, kind: input, shape index: {}]
  %s4 = inlined_call_operand.vmem [shape: f32[1,128], index: 4, kind: input, shape index: {}]
  %s5 = inlined_call_operand.hbm [shape: f32[8,128], index: 5, kind: output, shape index: {}]
  %s6 = sld [smem:[#allocation0]]
  $region42: #{tpu_custom_call.1} parent=0
    _
  %s8 = ssub.s32 1, %s6
  %s9 = scalar_select 0, %s8, %s6
  $region1: #{tpu_custom_call.1} parent=0
    #allocation2 [shape = 'u8[4096]{0}', space=vmem, size = 0x1000, scoped, tag = 'input window, operand 0, single buffered']
    #allocation3 [shape = 's32[1]{0}', space=sflag, size = 0x4, scoped, tag = 'scoped memory for tpu_custom_call.1']
    #allocation4 [shape = 's32[1]{0}', space=sflag, size = 0x4, scoped, tag = 'scoped memory for tpu_custom_call.1']
    #allocation5 [shape = 'u8[65536]{0}', space=vmem, size = 0x10000, scoped, tag = 'input window, operand 1, single buffered']
    #allocation6 [shape = 's32[1]{0}', space=sflag, size = 0x4, scoped, tag = 'scoped memory for tpu_custom_call.1']
    #allocation7 [shape = 'u8[131072]{0}', space=vmem, size = 0x20000, scoped, tag = 'input window, operand 3, single buffered']
    #allocation8 [shape = 'u8[4096]{0}', space=vmem, size = 0x1000, scoped, tag = 'output window, operand 0, single buffered']
    %10 = vsyncpa [#allocation3], 0
    %11 = vsyncpa [#allocation6], 0
    %12 = vsyncpa [#allocation4], 0
    // Predicated region
    $region2: #{tpu_custom_call.1} parent=1 // pred_check
      _
    $region3: #{tpu_custom_call.1} parent=1 // pred_check_branch
      %14 = sbr.rel (0) target = $region5
    $region4: #{tpu_custom_call.1} parent=1 // pred_region
      %s16 = ssub.s32 128, 128
      %17 = vsyncadd [#allocation3], %s16
      %s19 = sshll.u32 [#allocation2], 4
      %s20 = int_to_ptr.vmem [resolvable:$true] %s19
      %22 = dma.hbm_to_vmem [thread:$0]  %s0, 128, %s20, [#allocation3]
    $region5: #{tpu_custom_call.1} parent=1 // pred_fallthru
      _
    // Predicated region
    $region6: #{tpu_custom_call.1} parent=1 // pred_check
      _
    $region7: #{tpu_custom_call.1} parent=1 // pred_check_branch
      %24 = sbr.rel (0) target = $region9
    $region8: #{tpu_custom_call.1} parent=1 // pred_region
      %s26 = ssub.s32 2048, 2048
      %27 = vsyncadd [#allocation6], %s26
      %s28 = sshll.u32 [#allocation5], 4
      %s29 = int_to_ptr.vmem [resolvable:$true] %s28
      %34 = dma.hbm_to_vmem [thread:$0]  %s1, 2048, %s29, [#allocation6], 256, 256, 16
    $region9: #{tpu_custom_call.1} parent=1 // pred_fallthru
      _
    // Predicated region
    $region10: #{tpu_custom_call.1} parent=1 // pred_check
      _
    $region11: #{tpu_custom_call.1} parent=1 // pred_check_branch
      %36 = sbr.rel (0) target = $region13
    $region12: #{tpu_custom_call.1} parent=1 // pred_region
      _
    $region13: #{tpu_custom_call.1} parent=1 // pred_fallthru
      _
    // Predicated region
    $region14: #{tpu_custom_call.1} parent=1 // pred_check
      _
    $region15: #{tpu_custom_call.1} parent=1 // pred_check_branch
      %38 = sbr.rel (0) target = $region17
    $region16: #{tpu_custom_call.1} parent=1 // pred_region
      %s40 = ssub.s32 4096, 4096
      %41 = vsyncadd [#allocation6], %s40
      %s42 = sshll.u32 [#allocation7], 4
      %s43 = int_to_ptr.vmem [resolvable:$true] %s42
      %48 = dma.hbm_to_vmem [thread:$0]  %s3, 4096, %s43, [#allocation6], 64, 64, 4
    $region17: #{tpu_custom_call.1} parent=1 // pred_fallthru
      _
    // Predicated region
    $region18: #{tpu_custom_call.1} parent=1 // pred_check
      _
    $region19: #{tpu_custom_call.1} parent=1 // pred_check_branch
      %50 = sbr.rel (0) target = $region21
    $region20: #{tpu_custom_call.1} parent=1 // pred_region
      _
    $region21: #{tpu_custom_call.1} parent=1 // pred_fallthru
      _
    // Predicated region
    $region22: #{tpu_custom_call.1} parent=1 // pred_check
      _
    $region23: #{tpu_custom_call.1} parent=1 // pred_check_branch
      %52 = sbr.rel (0) target = $region25
    $region24: #{tpu_custom_call.1} parent=1 // pred_region
      %53 = dma.done [#allocation3], 128
    $region25: #{tpu_custom_call.1} parent=1 // pred_fallthru
      _
    // Predicated region
    $region26: #{tpu_custom_call.1} parent=1 // pred_check
      _
    $region27: #{tpu_custom_call.1} parent=1 // pred_check_branch
      %55 = sbr.rel (0) target = $region29
    $region28: #{tpu_custom_call.1} parent=1 // pred_region
      %56 = dma.done [#allocation6], 2048
    $region29: #{tpu_custom_call.1} parent=1 // pred_fallthru
      _
    // Predicated region
    $region30: #{tpu_custom_call.1} parent=1 // pred_check
      _
    $region31: #{tpu_custom_call.1} parent=1 // pred_check_branch
      %58 = sbr.rel (0) target = $region33
    $region32: #{tpu_custom_call.1} parent=1 // pred_region
      %59 = dma.done [#allocation6], 4096
    $region33: #{tpu_custom_call.1} parent=1 // pred_fallthru
      _
    %v61 = vld [vmem:[#allocation2] sm:$0xff]
    %v62 = vpack.c.bf16 %v61, %v61
    %v63 = vld [vmem:[#allocation5] sm:$0xff]
    %v64 = vld [vmem:[#allocation5 + $0x8] sm:$0xff]
    %v65 = vld [vmem:[#allocation5 + $0x10] sm:$0xff]
    %v66 = vld [vmem:[#allocation5 + $0x18] sm:$0xff]
    %v67 = vld [vmem:[#allocation5 + $0x20] sm:$0xff]
    %v68 = vld [vmem:[#allocation5 + $0x28] sm:$0xff]
    %v69 = vld [vmem:[#allocation5 + $0x30] sm:$0xff]
    %v70 = vld [vmem:[#allocation5 + $0x38] sm:$0xff]
    %v71 = vld [vmem:[#allocation5 + $0x40] sm:$0xff]
    %v72 = vld [vmem:[#allocation5 + $0x48] sm:$0xff]
    %v73 = vld [vmem:[#allocation5 + $0x50] sm:$0xff]
    %v74 = vld [vmem:[#allocation5 + $0x58] sm:$0xff]
    %v75 = vld [vmem:[#allocation5 + $0x60] sm:$0xff]
    %v76 = vld [vmem:[#allocation5 + $0x68] sm:$0xff]
    %v77 = vld [vmem:[#allocation5 + $0x70] sm:$0xff]
    %v78 = vld [vmem:[#allocation5 + $0x78] sm:$0xff]
    %v79 = vld [vmem:[%s2] sm:$0xf]
    %v81 = vlaneseq
    %v82 = vshrl.u32 %v81, 7
    %v83 = vsub.s32 0, %v82
    %v84 = vrot.slane %v79, %v83
    %v85 = vlaneseq
    %v86 = vshrl.u32 %v85, 7
    %v87 = vsub.s32 1, %v86
    %v88 = vrot.slane %v79, %v87
    %v89 = vlaneseq
    %v90 = vshrl.u32 %v89, 7
    %v91 = vsub.s32 2, %v90
    %v92 = vrot.slane %v79, %v91
    %v93 = vlaneseq
    %v94 = vshrl.u32 %v93, 7
    %v95 = vsub.s32 3, %v94
    %v96 = vrot.slane %v79, %v95
    %v117 = vunpack.c.l.b16 %v63
    %v118 = vunpack.c.h.b16 %v63
    %v119 = vunpack.c.l.b16 %v64
    %v120 = vunpack.c.h.b16 %v64
    %v121 = vunpack.c.l.b16 %v65
    %v122 = vunpack.c.h.b16 %v65
    %v123 = vunpack.c.l.b16 %v66
    %v124 = vunpack.c.h.b16 %v66
    %v125 = vunpack.c.l.b16 %v67
    %v126 = vunpack.c.h.b16 %v67
    %v127 = vunpack.c.l.b16 %v68
    %v128 = vunpack.c.h.b16 %v68
    %v129 = vunpack.c.l.b16 %v69
    %v130 = vunpack.c.h.b16 %v69
    %v131 = vunpack.c.l.b16 %v70
    %v132 = vunpack.c.h.b16 %v70
    %v133 = vunpack.c.l.b16 %v71
    %v134 = vunpack.c.h.b16 %v71
    %v135 = vunpack.c.l.b16 %v72
    %v136 = vunpack.c.h.b16 %v72
    %v137 = vunpack.c.l.b16 %v73
    %v138 = vunpack.c.h.b16 %v73
    %v139 = vunpack.c.l.b16 %v74
    %v140 = vunpack.c.h.b16 %v74
    %v141 = vunpack.c.l.b16 %v75
    %v142 = vunpack.c.h.b16 %v75
    %v143 = vunpack.c.l.b16 %v76
    %v144 = vunpack.c.h.b16 %v76
    %v145 = vunpack.c.l.b16 %v77
    %v146 = vunpack.c.h.b16 %v77
    %v147 = vunpack.c.l.b16 %v78
    %v148 = vunpack.c.h.b16 %v78
    %v149 = vpack.c.b16 %v121, %v117
    %v150 = vpack.c.b16 %v122, %v118
    %v151 = vpack.c.b16 %v123, %v119
    %v152 = vpack.c.b16 %v124, %v120
    %v153 = vpack.c.b16 %v129, %v125
    %v154 = vpack.c.b16 %v130, %v126
    %v155 = vpack.c.b16 %v131, %v127
    %v156 = vpack.c.b16 %v132, %v128
    %v157 = vpack.c.b16 %v137, %v133
    %v158 = vpack.c.b16 %v138, %v134
    %v159 = vpack.c.b16 %v139, %v135
    %v160 = vpack.c.b16 %v140, %v136
    %v161 = vpack.c.b16 %v145, %v141
    %v162 = vpack.c.b16 %v146, %v142
    %v163 = vpack.c.b16 %v147, %v143
    %v164 = vpack.c.b16 %v148, %v144
    %vm181 = vcmask 523264
    %v183 = vsel %vm181, %v62, 0
    %185 = vmatprep.subr.bf16.mxu0 %v150
    %186 = vmatpush1.bf16.msra.mxu0 %v149
    %187 = vmatprep.subr.bf16.mxu0 %v154
    %188 = vmatpush1.bf16.msra.mxu0 %v153
    %189 = vmatprep.subr.bf16.mxu0 %v158
    %190 = vmatpush1.bf16.msra.mxu0 %v157
    %191 = vmatprep.subr.bf16.mxu0 %v162
    %192 = vmatpush1.bf16.msra.mxu0 %v161
    %193 = vmatprep.subr.bf16.mxu0 0
    %194 = vmatpush1.bf16.msra.mxu0 0
    %195 = vmatprep.subr.bf16.mxu0 0
    %196 = vmatpush1.bf16.msra.mxu0 0
    %197 = vmatprep.subr.bf16.mxu0 0
    %198 = vmatpush1.bf16.msra.mxu0 0
    %199 = vmatprep.subr.bf16.mxu0 0
    %200 = vmatpush1.bf16.msra.mxu0 0
    %201 = vmatprep.subr.bf16.mxu0 0
    %202 = vmatpush1.bf16.msra.mxu0 0
    %203 = vmatprep.subr.bf16.mxu0 0
    %204 = vmatpush1.bf16.msra.mxu0 0
    %205 = vmatprep.subr.bf16.mxu0 0
    %206 = vmatpush1.bf16.msra.mxu0 0
    %207 = vmatprep.subr.bf16.mxu0 0
    %208 = vmatpush1.bf16.msra.mxu0 0
    %209 = vmatprep.subr.bf16.mxu0 0
    %210 = vmatpush1.bf16.msra.mxu0 0
    %211 = vmatprep.subr.bf16.mxu0 0
    %212 = vmatpush1.bf16.msra.mxu0 0
    %213 = vmatprep.subr.bf16.mxu0 0
    %214 = vmatpush1.bf16.msra.mxu0 0
    %215 = vmatprep.subr.bf16.mxu0 0
    %216 = vmatpush1.bf16.msra.mxu0 0
    %217 = vmatprep.mubr.bf16.mxu0 0
    %218 = vmatmul.mubr.bf16.gmra.mrb[0].mxu0 %v183
    %v219 = vpop.f32.mrb[0].mxu0
    %v220 = vadd.f32 %v84, %v219
    %v221 = vpop.f32.mrb[0].mxu0
    %v222 = vadd.f32 %v88, %v221
    %v223 = vpop.f32.mrb[0].mxu0
    %v224 = vpop.f32.mrb[0].mxu0
    %225 = vdwg.mxu0
    %226 = vmatprep.subr.bf16.mxu0 %v152
    %227 = vmatpush1.bf16.msra.mxu0 %v151
    %228 = vmatprep.subr.bf16.mxu0 %v156
    %229 = vmatpush1.bf16.msra.mxu0 %v155
    %230 = vmatprep.subr.bf16.mxu0 %v160
    %231 = vmatpush1.bf16.msra.mxu0 %v159
    %232 = vmatprep.subr.bf16.mxu0 %v164
    %233 = vmatpush1.bf16.msra.mxu0 %v163
    %234 = vmatprep.subr.bf16.mxu0 0
    %235 = vmatpush1.bf16.msra.mxu0 0
    %236 = vmatprep.subr.bf16.mxu0 0
    %237 = vmatpush1.bf16.msra.mxu0 0
    %238 = vmatprep.subr.bf16.mxu0 0
    %239 = vmatpush1.bf16.msra.mxu0 0
    %240 = vmatprep.subr.bf16.mxu0 0
    %241 = vmatpush1.bf16.msra.mxu0 0
    %242 = vmatprep.subr.bf16.mxu0 0
    %243 = vmatpush1.bf16.msra.mxu0 0
    %244 = vmatprep.subr.bf16.mxu0 0
    %245 = vmatpush1.bf16.msra.mxu0 0
    %246 = vmatprep.subr.bf16.mxu0 0
    %247 = vmatpush1.bf16.msra.mxu0 0
    %248 = vmatprep.subr.bf16.mxu0 0
    %249 = vmatpush1.bf16.msra.mxu0 0
    %250 = vmatprep.subr.bf16.mxu0 0
    %251 = vmatpush1.bf16.msra.mxu0 0
    %252 = vmatprep.subr.bf16.mxu0 0
    %253 = vmatpush1.bf16.msra.mxu0 0
    %254 = vmatprep.subr.bf16.mxu0 0
    %255 = vmatpush1.bf16.msra.mxu0 0
    %256 = vmatprep.subr.bf16.mxu0 0
    %257 = vmatpush1.bf16.msra.mxu0 0
    %258 = vmatprep.mubr.bf16.mxu0 0
    %259 = vmatmul.mubr.bf16.gmra.mrb[0].mxu0 %v183
    %v260 = vpop.f32.mrb[0].mxu0
    %v261 = vadd.f32 %v92, %v260
    %v262 = vpop.f32.mrb[0].mxu0
    %v263 = vadd.f32 %v96, %v262
    %v264 = vpop.f32.mrb[0].mxu0
    %v265 = vpop.f32.mrb[0].mxu0
    %266 = vdwg.mxu0
    %v267 = vmax.f32 %v220, 0.0
    %v268 = vmax.f32 %v222, 0.0
    %v269 = vmax.f32 %v261, 0.0
    %v270 = vmax.f32 %v263, 0.0
    %v271 = vpack.c.bf16 %v267, %v267
    %v272 = vpack.c.bf16 %v268, %v268
    %v273 = vpack.c.bf16 %v269, %v269
    %v274 = vpack.c.bf16 %v270, %v270
    %v275 = vld [vmem:[#allocation7] sm:$0xf]
    %v276 = vld [vmem:[#allocation7 + $0x4] sm:$0xf]
    %v277 = vld [vmem:[#allocation7 + $0x8] sm:$0xf]
    %v278 = vld [vmem:[#allocation7 + $0xc] sm:$0xf]
    %v279 = vld [vmem:[#allocation7 + $0x10] sm:$0xf]
    %v280 = vld [vmem:[#allocation7 + $0x14] sm:$0xf]
    %v281 = vld [vmem:[#allocation7 + $0x18] sm:$0xf]
    %v282 = vld [vmem:[#allocation7 + $0x1c] sm:$0xf]
    %v283 = vld [vmem:[#allocation7 + $0x20] sm:$0xf]
    %v284 = vld [vmem:[#allocation7 + $0x24] sm:$0xf]
    %v285 = vld [vmem:[#allocation7 + $0x28] sm:$0xf]
    %v286 = vld [vmem:[#allocation7 + $0x2c] sm:$0xf]
    %v287 = vld [vmem:[#allocation7 + $0x30] sm:$0xf]
    %v288 = vld [vmem:[#allocation7 + $0x34] sm:$0xf]
    %v289 = vld [vmem:[#allocation7 + $0x38] sm:$0xf]
    %v290 = vld [vmem:[#allocation7 + $0x3c] sm:$0xf]
    %v291 = vld [vmem:[#allocation7 + $0x40] sm:$0xf]
    %v292 = vld [vmem:[#allocation7 + $0x44] sm:$0xf]
    %v293 = vld [vmem:[#allocation7 + $0x48] sm:$0xf]
    %v294 = vld [vmem:[#allocation7 + $0x4c] sm:$0xf]
    %v295 = vld [vmem:[#allocation7 + $0x50] sm:$0xf]
    %v296 = vld [vmem:[#allocation7 + $0x54] sm:$0xf]
    %v297 = vld [vmem:[#allocation7 + $0x58] sm:$0xf]
    %v298 = vld [vmem:[#allocation7 + $0x5c] sm:$0xf]
    %v299 = vld [vmem:[#allocation7 + $0x60] sm:$0xf]
    %v300 = vld [vmem:[#allocation7 + $0x64] sm:$0xf]
    %v301 = vld [vmem:[#allocation7 + $0x68] sm:$0xf]
    %v302 = vld [vmem:[#allocation7 + $0x6c] sm:$0xf]
    %v303 = vld [vmem:[#allocation7 + $0x70] sm:$0xf]
    %v304 = vld [vmem:[#allocation7 + $0x74] sm:$0xf]
    %v305 = vld [vmem:[#allocation7 + $0x78] sm:$0xf]
    %v306 = vld [vmem:[#allocation7 + $0x7c] sm:$0xf]
    %v307 = vld [vmem:[#allocation7 + $0x80] sm:$0xf]
    %v308 = vld [vmem:[#allocation7 + $0x84] sm:$0xf]
    %v309 = vld [vmem:[#allocation7 + $0x88] sm:$0xf]
    %v310 = vld [vmem:[#allocation7 + $0x8c] sm:$0xf]
    %v311 = vld [vmem:[#allocation7 + $0x90] sm:$0xf]
    %v312 = vld [vmem:[#allocation7 + $0x94] sm:$0xf]
    %v313 = vld [vmem:[#allocation7 + $0x98] sm:$0xf]
    %v314 = vld [vmem:[#allocation7 + $0x9c] sm:$0xf]
    %v315 = vld [vmem:[#allocation7 + $0xa0] sm:$0xf]
    %v316 = vld [vmem:[#allocation7 + $0xa4] sm:$0xf]
    %v317 = vld [vmem:[#allocation7 + $0xa8] sm:$0xf]
    %v318 = vld [vmem:[#allocation7 + $0xac] sm:$0xf]
    %v319 = vld [vmem:[#allocation7 + $0xb0] sm:$0xf]
    %v320 = vld [vmem:[#allocation7 + $0xb4] sm:$0xf]
    %v321 = vld [vmem:[#allocation7 + $0xb8] sm:$0xf]
    %v322 = vld [vmem:[#allocation7 + $0xbc] sm:$0xf]
    %v323 = vld [vmem:[#allocation7 + $0xc0] sm:$0xf]
    %v324 = vld [vmem:[#allocation7 + $0xc4] sm:$0xf]
    %v325 = vld [vmem:[#allocation7 + $0xc8] sm:$0xf]
    %v326 = vld [vmem:[#allocation7 + $0xcc] sm:$0xf]
    %v327 = vld [vmem:[#allocation7 + $0xd0] sm:$0xf]
    %v328 = vld [vmem:[#allocation7 + $0xd4] sm:$0xf]
    %v329 = vld [vmem:[#allocation7 + $0xd8] sm:$0xf]
    %v330 = vld [vmem:[#allocation7 + $0xdc] sm:$0xf]
    %v331 = vld [vmem:[#allocation7 + $0xe0] sm:$0xf]
    %v332 = vld [vmem:[#allocation7 + $0xe4] sm:$0xf]
    %v333 = vld [vmem:[#allocation7 + $0xe8] sm:$0xf]
    %v334 = vld [vmem:[#allocation7 + $0xec] sm:$0xf]
    %v335 = vld [vmem:[#allocation7 + $0xf0] sm:$0xf]
    %v336 = vld [vmem:[#allocation7 + $0xf4] sm:$0xf]
    %v337 = vld [vmem:[#allocation7 + $0xf8] sm:$0xf]
    %v338 = vld [vmem:[#allocation7 + $0xfc] sm:$0xf]
    %v339 = vld [vmem:[%s4] sm:$0x1]
    %v341 = vlaneseq
    %v342 = vshrl.u32 %v341, 7
    %v343 = vsub.s32 0, %v342
    %v344 = vrot.slane %v339, %v343
    %v410 = vunpack.c.l.b16 %v275
    %v411 = vunpack.c.l.b16 %v276
    %v412 = vunpack.c.l.b16 %v277
    %v413 = vunpack.c.l.b16 %v278
    %v414 = vunpack.c.l.b16 %v279
    %v415 = vunpack.c.l.b16 %v280
    %v416 = vunpack.c.l.b16 %v281
    %v417 = vunpack.c.l.b16 %v282
    %v418 = vunpack.c.l.b16 %v283
    %v419 = vunpack.c.l.b16 %v284
    %v420 = vunpack.c.l.b16 %v285
    %v421 = vunpack.c.l.b16 %v286
    %v422 = vunpack.c.l.b16 %v287
    %v423 = vunpack.c.l.b16 %v288
    %v424 = vunpack.c.l.b16 %v289
    %v425 = vunpack.c.l.b16 %v290
    %v426 = vunpack.c.l.b16 %v291
    %v427 = vunpack.c.l.b16 %v292
    %v428 = vunpack.c.l.b16 %v293
    %v429 = vunpack.c.l.b16 %v294
    %v430 = vunpack.c.l.b16 %v295
    %v431 = vunpack.c.l.b16 %v296
    %v432 = vunpack.c.l.b16 %v297
    %v433 = vunpack.c.l.b16 %v298
    %v434 = vunpack.c.l.b16 %v299
    %v435 = vunpack.c.l.b16 %v300
    %v436 = vunpack.c.l.b16 %v301
    %v437 = vunpack.c.l.b16 %v302
    %v438 = vunpack.c.l.b16 %v303
    %v439 = vunpack.c.l.b16 %v304
    %v440 = vunpack.c.l.b16 %v305
    %v441 = vunpack.c.l.b16 %v306
    %v442 = vunpack.c.l.b16 %v307
    %v443 = vunpack.c.l.b16 %v308
    %v444 = vunpack.c.l.b16 %v309
    %v445 = vunpack.c.l.b16 %v310
    %v446 = vunpack.c.l.b16 %v311
    %v447 = vunpack.c.l.b16 %v312
    %v448 = vunpack.c.l.b16 %v313
    %v449 = vunpack.c.l.b16 %v314
    %v450 = vunpack.c.l.b16 %v315
    %v451 = vunpack.c.l.b16 %v316
    %v452 = vunpack.c.l.b16 %v317
    %v453 = vunpack.c.l.b16 %v318
    %v454 = vunpack.c.l.b16 %v319
    %v455 = vunpack.c.l.b16 %v320
    %v456 = vunpack.c.l.b16 %v321
    %v457 = vunpack.c.l.b16 %v322
    %v458 = vunpack.c.l.b16 %v323
    %v459 = vunpack.c.l.b16 %v324
    %v460 = vunpack.c.l.b16 %v325
    %v461 = vunpack.c.l.b16 %v326
    %v462 = vunpack.c.l.b16 %v327
    %v463 = vunpack.c.l.b16 %v328
    %v464 = vunpack.c.l.b16 %v329
    %v465 = vunpack.c.l.b16 %v330
    %v466 = vunpack.c.l.b16 %v331
    %v467 = vunpack.c.l.b16 %v332
    %v468 = vunpack.c.l.b16 %v333
    %v469 = vunpack.c.l.b16 %v334
    %v470 = vunpack.c.l.b16 %v335
    %v471 = vunpack.c.l.b16 %v336
    %v472 = vunpack.c.l.b16 %v337
    %v473 = vunpack.c.l.b16 %v338
    %v474 = vpack.c.b16 %v411, %v410
    %v475 = vpack.c.b16 %v413, %v412
    %v476 = vpack.c.b16 %v415, %v414
    %v477 = vpack.c.b16 %v417, %v416
    %v478 = vpack.c.b16 %v419, %v418
    %v479 = vpack.c.b16 %v421, %v420
    %v480 = vpack.c.b16 %v423, %v422
    %v481 = vpack.c.b16 %v425, %v424
    %v482 = vpack.c.b16 %v427, %v426
    %v483 = vpack.c.b16 %v429, %v428
    %v484 = vpack.c.b16 %v431, %v430
    %v485 = vpack.c.b16 %v433, %v432
    %v486 = vpack.c.b16 %v435, %v434
    %v487 = vpack.c.b16 %v437, %v436
    %v488 = vpack.c.b16 %v439, %v438
    %v489 = vpack.c.b16 %v441, %v440
    %v490 = vpack.c.b16 %v443, %v442
    %v491 = vpack.c.b16 %v445, %v444
    %v492 = vpack.c.b16 %v447, %v446
    %v493 = vpack.c.b16 %v449, %v448
    %v494 = vpack.c.b16 %v451, %v450
    %v495 = vpack.c.b16 %v453, %v452
    %v496 = vpack.c.b16 %v455, %v454
    %v497 = vpack.c.b16 %v457, %v456
    %v498 = vpack.c.b16 %v459, %v458
    %v499 = vpack.c.b16 %v461, %v460
    %v500 = vpack.c.b16 %v463, %v462
    %v501 = vpack.c.b16 %v465, %v464
    %v502 = vpack.c.b16 %v467, %v466
    %v503 = vpack.c.b16 %v469, %v468
    %v504 = vpack.c.b16 %v471, %v470
    %v505 = vpack.c.b16 %v473, %v472
    %538 = vmatprep.subr.bf16.mxu0 0
    %539 = vmatpush1.bf16.msra.mxu0 %v474
    %540 = vmatprep.subr.bf16.mxu0 0
    %541 = vmatpush1.bf16.msra.mxu0 %v475
    %542 = vmatprep.subr.bf16.mxu0 0
    %543 = vmatpush1.bf16.msra.mxu0 %v476
    %544 = vmatprep.subr.bf16.mxu0 0
    %545 = vmatpush1.bf16.msra.mxu0 %v477
    %546 = vmatprep.subr.bf16.mxu0 0
    %547 = vmatpush1.bf16.msra.mxu0 %v478
    %548 = vmatprep.subr.bf16.mxu0 0
    %549 = vmatpush1.bf16.msra.mxu0 %v479
    %550 = vmatprep.subr.bf16.mxu0 0
    %551 = vmatpush1.bf16.msra.mxu0 %v480
    %552 = vmatprep.subr.bf16.mxu0 0
    %553 = vmatpush1.bf16.msra.mxu0 %v481
    %554 = vmatprep.subr.bf16.mxu0 0
    %555 = vmatpush1.bf16.msra.mxu0 %v482
    %556 = vmatprep.subr.bf16.mxu0 0
    %557 = vmatpush1.bf16.msra.mxu0 %v483
    %558 = vmatprep.subr.bf16.mxu0 0
    %559 = vmatpush1.bf16.msra.mxu0 %v484
    %560 = vmatprep.subr.bf16.mxu0 0
    %561 = vmatpush1.bf16.msra.mxu0 %v485
    %562 = vmatprep.subr.bf16.mxu0 0
    %563 = vmatpush1.bf16.msra.mxu0 %v486
    %564 = vmatprep.subr.bf16.mxu0 0
    %565 = vmatpush1.bf16.msra.mxu0 %v487
    %566 = vmatprep.subr.bf16.mxu0 0
    %567 = vmatpush1.bf16.msra.mxu0 %v488
    %568 = vmatprep.subr.bf16.mxu0 0
    %569 = vmatpush1.bf16.msra.mxu0 %v489
    %570 = vmatprep.mubr.bf16.mxu0 %v272
    %571 = vmatmul.mubr.bf16.gmra.mrb[0].mxu0 %v271
    %v572 = vpop.f32.mrb[0].mxu0
    %v573 = vadd.f32 %v344, %v572
    %v574 = vpop.f32.mrb[0].mxu0
    %v575 = vpop.f32.mrb[0].mxu0
    %v576 = vpop.f32.mrb[0].mxu0
    %577 = vdwg.mxu0
    %578 = vmatprep.subr.bf16.mxu0 0
    %579 = vmatpush1.bf16.msra.mxu0 %v490
    %580 = vmatprep.subr.bf16.mxu0 0
    %581 = vmatpush1.bf16.msra.mxu0 %v491
    %582 = vmatprep.subr.bf16.mxu0 0
    %583 = vmatpush1.bf16.msra.mxu0 %v492
    %584 = vmatprep.subr.bf16.mxu0 0
    %585 = vmatpush1.bf16.msra.mxu0 %v493
    %586 = vmatprep.subr.bf16.mxu0 0
    %587 = vmatpush1.bf16.msra.mxu0 %v494
    %588 = vmatprep.subr.bf16.mxu0 0
    %589 = vmatpush1.bf16.msra.mxu0 %v495
    %590 = vmatprep.subr.bf16.mxu0 0
    %591 = vmatpush1.bf16.msra.mxu0 %v496
    %592 = vmatprep.subr.bf16.mxu0 0
    %593 = vmatpush1.bf16.msra.mxu0 %v497
    %594 = vmatprep.subr.bf16.mxu0 0
    %595 = vmatpush1.bf16.msra.mxu0 %v498
    %596 = vmatprep.subr.bf16.mxu0 0
    %597 = vmatpush1.bf16.msra.mxu0 %v499
    %598 = vmatprep.subr.bf16.mxu0 0
    %599 = vmatpush1.bf16.msra.mxu0 %v500
    %600 = vmatprep.subr.bf16.mxu0 0
    %601 = vmatpush1.bf16.msra.mxu0 %v501
    %602 = vmatprep.subr.bf16.mxu0 0
    %603 = vmatpush1.bf16.msra.mxu0 %v502
    %604 = vmatprep.subr.bf16.mxu0 0
    %605 = vmatpush1.bf16.msra.mxu0 %v503
    %606 = vmatprep.subr.bf16.mxu0 0
    %607 = vmatpush1.bf16.msra.mxu0 %v504
    %608 = vmatprep.subr.bf16.mxu0 0
    %609 = vmatpush1.bf16.msra.mxu0 %v505
    %610 = vmatprep.mubr.bf16.mxu0 %v274
    %611 = vmatmul.mubr.bf16.gmra.mrb[0].mxu0 %v273
    %v612 = vpop.f32.mrb[0].mxu0
    %v613 = vadd.f32 %v573, %v612
    %v614 = vpop.f32.mrb[0].mxu0
    %v615 = vpop.f32.mrb[0].mxu0
    %v616 = vpop.f32.mrb[0].mxu0
    %617 = vdwg.mxu0
    %618 = vst [vmem:[#allocation8] sm:$0xff] %v613
    // Predicated region
    $region34: #{tpu_custom_call.1} parent=1 // pred_check
      _
    $region35: #{tpu_custom_call.1} parent=1 // pred_check_branch
      %620 = sbr.rel (0) target = $region37
    $region36: #{tpu_custom_call.1} parent=1 // pred_region
      %s622 = ssub.s32 128, 128
      %623 = vsyncadd [#allocation4], %s622
      %s625 = sshll.u32 [#allocation8], 4
      %s626 = int_to_ptr.vmem [resolvable:$true] %s625
      %628 = dma.vmem_to_hbm [thread:$0]  %s626, 128, %s5, [#allocation4]
    $region37: #{tpu_custom_call.1} parent=1 // pred_fallthru
      _
    // Predicated region
    $region38: #{tpu_custom_call.1} parent=1 // pred_check
      _
    $region39: #{tpu_custom_call.1} parent=1 // pred_check_branch
      %630 = sbr.rel (0) target = $region41
    $region40: #{tpu_custom_call.1} parent=1 // pred_region
      %631 = dma.done [#allocation4], 128
    $region41: #{tpu_custom_call.1} parent=1 // pred_fallthru
      _
    %632 = vsyncpa [#allocation3], 1
    %633 = vsyncpa [#allocation6], 1
    %634 = vsyncpa [#allocation4], 1

</llo_original>
